<compile_context>
chip_gen: v6e
topology: v6e:2x2x1
jax: 0.10.0
libtpu: 0.0.40
codegen_flags: <defaults>
</compile_context>

<pallas_src>
import jax
import jax.numpy as jnp
from jax import lax
from jax.experimental import pallas as pl
from jax.experimental.pallas import tpu as pltpu


def _pick_tile_n(N, C, budget_bytes=8 * 1024 * 1024):
    """Largest multiple-of-128 tile of the spatial axis that divides N and keeps the
    per-step working set (double-buffered x + f/shadow + accumulators) within budget."""
    if N % 128 != 0:
        return N  # full-extent block is always legal
    best = 128
    tn = 128
    while tn <= min(N, 4096):
        if N % tn == 0 and 8 * C * tn * 4 <= budget_bytes:
            best = tn
        tn += 128
    return best


def _mean_ema_kernel(decay_ref, x_ref, shadow_ref, ema_ref, acc_ref):
    # grid = (N/TN, B): N-tiles parallel, batch (reduction) innermost.
    # decay_ref: (1,) f32 SMEM;  x_ref: (1, C, TN);  shadow_ref/ema_ref: (TN, C);
    # acc_ref: (C, TN) f32 VMEM scratch (batch-sum accumulator).
    b = pl.program_id(1)
    nb = pl.num_programs(1)

    @pl.when(b == 0)
    def _():
        acc_ref[...] = jnp.zeros_like(acc_ref)

    acc_ref[...] += x_ref[0]

    @pl.when(b == nb - 1)
    def _():
        d = decay_ref[0]
        mean_nc = acc_ref[...].T * (1.0 / jnp.float32(nb))        # (TN, C) batch mean
        ema_ref[...] = (1.0 - d) * mean_nc + d * shadow_ref[...]  # fused EMA blend


def _corr_kernel(x_ref, f_ref, out_ref, acc_ref, cov_ref):
    # grid = (B, N/TN): batches parallel, spatial contraction innermost.
    # x_ref: (1, C, TN);  f_ref: (C, TN);  out_ref: (1, C, C);
    # acc_ref: (C, C) f32 scratch (Gram accumulator);  cov_ref: (C, 1) f32 scratch (diag).
    k = pl.program_id(1)

    @pl.when(k == 0)
    def _():
        acc_ref[...] = jnp.zeros_like(acc_ref)
        cov_ref[...] = jnp.zeros_like(cov_ref)

    a = x_ref[0] - f_ref[...]                                     # centered (C, TN)
    # diag(Local) == sum_n a^2: VPU/XLU work that overlaps the MXU matmul below.
    cov_ref[...] += jnp.sum(a * a, axis=1, keepdims=True)
    # Local partial: A_k @ A_k^T on the MXU (contract the spatial/lane axis).
    # TODO(synk): optionally cast `a` to bf16 here for v6e/v7x MXU peak (keeps f32 acc);
    # left in f32 to stay within the 1e-4 reference tolerance.
    acc_ref[...] += lax.dot_general(a, a, (((1,), (1,)), ((), ())),
                                    preferred_element_type=jnp.float32)

    @pl.when(k == pl.num_programs(1) - 1)
    def _():
        # Local / sqrt(cov @ cov^T) + 1  ==  Local * rsqrt(cov) * rsqrt(cov)^T + 1
        inv = lax.rsqrt(cov_ref[...])                             # (C, 1), EUP
        out_ref[0] = acc_ref[...] * (inv * inv.T) + 1.0


def smg_block_forward(x, shadow_fm, decay):
    """x: (B, C, H, W); shadow_fm: (N, C) EMA state (N = H*W); decay: scalar
    (first_decay=0.0 on the first call, 0.95 afterwards).
    Returns (correlation (B, C, C), updated shadow_fm (N, C))."""
    B, C, H, W = x.shape
    N = H * W
    x_flat = x.reshape(B, C, N).astype(jnp.float32)
    shadow_fm = shadow_fm.astype(jnp.float32)
    decay_arr = jnp.reshape(jnp.asarray(decay, dtype=jnp.float32), (1,))

    TN = _pick_tile_n(N, C)
    num_n = N // TN
    cparams = pltpu.CompilerParams(
        dimension_semantics=("parallel", "arbitrary"),
        vmem_limit_bytes=32 * 1024 * 1024,
    )

    # --- kernel 1: batch mean + fused EMA blend, emitted in (N, C) layout -------------
    new_shadow = pl.pallas_call(
        _mean_ema_kernel,
        out_shape=jax.ShapeDtypeStruct((N, C), jnp.float32),
        grid_spec=pltpu.PrefetchScalarGridSpec(
            num_scalar_prefetch=0,
            grid=(num_n, B),
            in_specs=[
                pl.BlockSpec(memory_space=pltpu.MemorySpace.SMEM),   # decay scalar
                pl.BlockSpec((1, C, TN), lambda n, b: (b, 0, n)),    # x
                pl.BlockSpec((TN, C), lambda n, b: (n, 0)),          # old shadow
            ],
            out_specs=pl.BlockSpec((TN, C), lambda n, b: (n, 0)),
            scratch_shapes=[pltpu.VMEM((C, TN), jnp.float32)],
        ),
        compiler_params=cparams,
    )(decay_arr, x_flat, shadow_fm)

    # PyTorch's f_mean.view(1, C, N): a row-major reshape of the (N, C) buffer.
    # This permutation is intentional (exact module semantics); it's a free
    # layout-preserving reshape in XLA, not a transpose.
    f_reshaped = new_shadow.reshape(C, N)

    # --- kernel 2: per-batch centered Gram + normalized correlation -------------------
    corr = pl.pallas_call(
        _corr_kernel,
        out_shape=jax.ShapeDtypeStruct((B, C, C), jnp.float32),
        grid_spec=pltpu.PrefetchScalarGridSpec(
            num_scalar_prefetch=0,
            grid=(B, num_n),
            in_specs=[
                pl.BlockSpec((1, C, TN), lambda b, k: (b, 0, k)),    # x
                pl.BlockSpec((C, TN), lambda b, k: (0, k)),          # f (reshaped EMA)
            ],
            out_specs=pl.BlockSpec((1, C, C), lambda b, k: (b, 0, 0)),
            scratch_shapes=[pltpu.VMEM((C, C), jnp.float32),
                            pltpu.VMEM((C, 1), jnp.float32)],
        ),
        compiler_params=cparams,
    )(x_flat, f_reshaped)
    return corr, new_shadow


def _reference(x, shadow_fm, decay):
    B, C, H, W = x.shape
    N = H * W
    xf = x.reshape(B, C, N)
    theta = jnp.transpose(xf, (0, 2, 1))                          # (B, N, C)
    f_mean = (1.0 - decay) * jnp.mean(theta, axis=0) + decay * shadow_fm
    f = f_mean.reshape(1, C, N)
    ft = jnp.transpose(f, (0, 2, 1))
    local = jnp.matmul(jnp.transpose(theta, (0, 2, 1)) - f, theta - ft)
    cov = jnp.sum(local * jnp.eye(C, dtype=x.dtype)[None], axis=2)[..., None]
    norm = jnp.sqrt(jnp.matmul(cov, jnp.transpose(cov, (0, 2, 1))))
    return local / norm + 1.0, f_mean


if __name__ == "__main__":
    B, C, H, W = 2, 8, 16, 16          # small shapes; N = H*W = 256 (f_map_size)
    N = H * W

    key = jax.random.PRNGKey(0)
    k1, k2 = jax.random.split(key)
    x1 = jax.random.normal(k1, (B, C, H, W), dtype=jnp.float32)
    x2 = jax.random.normal(k2, (B, C, H, W), dtype=jnp.float32)

    shadow0 = jnp.zeros((N, C), dtype=jnp.float32)   # EMA_FM init

    fwd = jax.jit(smg_block_forward)
    # First call: is_first=True -> first_decay = 0.0.  Second call: decay = 0.95.
    corr1, shadow1 = fwd(x1, shadow0, jnp.float32(0.0))
    corr2, shadow2 = fwd(x2, shadow1, jnp.float32(0.95))
    jax.block_until_ready((corr1, corr2, shadow1, shadow2))

    ref1, rsh1 = _reference(x1, shadow0, 0.0)
    ref2, rsh2 = _reference(x2, rsh1, 0.95)

    assert corr1.shape == (B, C, C)
    assert jnp.allclose(shadow1, rsh1, rtol=1e-5, atol=1e-6), "EMA mismatch (call 1)"
    assert jnp.allclose(corr1, ref1, rtol=1e-4, atol=1e-4), "corr mismatch (call 1)"
    assert jnp.allclose(shadow2, rsh2, rtol=1e-5, atol=1e-6), "EMA mismatch (call 2)"
    assert jnp.allclose(corr2, ref2, rtol=1e-4, atol=1e-4), "corr mismatch (call 2)"

    print("KERNEL_OK")
</pallas_src>

<mosaic_0001>
module attributes {stable_mosaic.version = 11 : i64} {
  func.func @_mean_ema_kernel(%arg0: i32, %arg1: i32, %arg2: memref<1xf32, #tpu.memory_space<smem>>, %arg3: memref<1x8x256xf32, #tpu.memory_space<vmem>>, %arg4: memref<256x8xf32, #tpu.memory_space<vmem>>, %arg5: memref<256x8xf32, #tpu.memory_space<vmem>>, %arg6: memref<8x256xf32, #tpu.memory_space<vmem>>) attributes {dimension_semantics = [#tpu.dimension_semantics<parallel>, #tpu.dimension_semantics<arbitrary>], iteration_bounds = array<i64: 1, 2>, scalar_prefetch = 0 : i64, scratch_operands = 1 : i64, tpu.core_type = #tpu.core_type<tc>, window_params = [{transform_indices = @transform_0, window_bounds = array<i64: 1>}, {transform_indices = @transform_1, window_bounds = array<i64: 1, 8, 256>}, {transform_indices = @transform_2, window_bounds = array<i64: 256, 8>}, {transform_indices = @transform_3, window_bounds = array<i64: 256, 8>}]} {
    %c0_i32 = arith.constant 0 : i32
    %0 = arith.cmpi eq, %arg1, %c0_i32 : i32
    %1 = arith.extui %0 : i1 to i32
    %c0_i32_0 = arith.constant 0 : i32
    %2 = arith.cmpi ne, %1, %c0_i32_0 : i32
    scf.if %2 {
      %cst = arith.constant 0.000000e+00 : f32
      %11 = vector.broadcast %cst : f32 to vector<8x256xf32>
      %c0_8 = arith.constant 0 : index
      %c0_9 = arith.constant 0 : index
      %12 = vector.load %arg6[%c0_8, %c0_9] : memref<8x256xf32, #tpu.memory_space<vmem>>, vector<8x256xf32>
      tpu.vector_store %arg6[%c0_8, %c0_9], %11 {strides = array<i32>} : memref<8x256xf32, #tpu.memory_space<vmem>>, vector<8x256xf32>,
    } else {
    }
    %c0 = arith.constant 0 : index
    %c0_1 = arith.constant 0 : index
    %3 = vector.load %arg6[%c0, %c0_1] : memref<8x256xf32, #tpu.memory_space<vmem>>, vector<8x256xf32>
    %c0_2 = arith.constant 0 : index
    %c0_3 = arith.constant 0 : index
    %c0_4 = arith.constant 0 : index
    %4 = vector.load %arg3[%c0_2, %c0_3, %c0_4] : memref<1x8x256xf32, #tpu.memory_space<vmem>>, vector<1x8x256xf32>
    %5 = vector.shape_cast %4 : vector<1x8x256xf32> to vector<8x256xf32>
    %6 = arith.addf %3, %5 : vector<8x256xf32>
    %c0_5 = arith.constant 0 : index
    %c0_6 = arith.constant 0 : index
    %7 = vector.load %arg6[%c0_5, %c0_6] : memref<8x256xf32, #tpu.memory_space<vmem>>, vector<8x256xf32>
    tpu.vector_store %arg6[%c0_5, %c0_6], %6 {strides = array<i32>} : memref<8x256xf32, #tpu.memory_space<vmem>>, vector<8x256xf32>,
    %c1_i32 = arith.constant 1 : i32
    %8 = arith.cmpi eq, %arg1, %c1_i32 : i32
    %9 = arith.extui %8 : i1 to i32
    %c0_i32_7 = arith.constant 0 : i32
    %10 = arith.cmpi ne, %9, %c0_i32_7 : i32
    scf.if %10 {
      %c0_8 = arith.constant 0 : index
      %11 = memref.load %arg2[%c0_8] : memref<1xf32, #tpu.memory_space<smem>>
      %c0_9 = arith.constant 0 : index
      %c0_10 = arith.constant 0 : index
      %12 = vector.load %arg6[%c0_9, %c0_10] : memref<8x256xf32, #tpu.memory_space<vmem>>, vector<8x256xf32>
      %13 = tpu.transpose %12, [1, 0] : vector<8x256xf32> -> vector<256x8xf32>
      %cst = arith.constant 1.000000e+00 : f32
      %cst_11 = arith.constant 2.000000e+00 : f32
      %14 = arith.divf %cst, %cst_11 : f32
      %15 = vector.broadcast %14 : f32 to vector<256x8xf32>
      %16 = arith.mulf %13, %15 : vector<256x8xf32>
      %cst_12 = arith.constant 1.000000e+00 : f32
      %17 = arith.subf %cst_12, %11 : f32
      %18 = vector.broadcast %17 : f32 to vector<256x8xf32>
      %19 = arith.mulf %18, %16 : vector<256x8xf32>
      %c0_13 = arith.constant 0 : index
      %c0_14 = arith.constant 0 : index
      %20 = vector.load %arg4[%c0_13, %c0_14] : memref<256x8xf32, #tpu.memory_space<vmem>>, vector<256x8xf32>
      %21 = vector.broadcast %11 : f32 to vector<256x8xf32>
      %22 = arith.mulf %21, %20 : vector<256x8xf32>
      %23 = arith.addf %19, %22 : vector<256x8xf32>
      %c0_15 = arith.constant 0 : index
      %c0_16 = arith.constant 0 : index
      %24 = vector.load %arg5[%c0_15, %c0_16] : memref<256x8xf32, #tpu.memory_space<vmem>>, vector<256x8xf32>
      tpu.vector_store %arg5[%c0_15, %c0_16], %23 {strides = array<i32>} : memref<256x8xf32, #tpu.memory_space<vmem>>, vector<256x8xf32>,
    } else {
    }
    return
  }
  func.func @transform_0(%arg0: i32, %arg1: i32) -> i32 {
    %c0_i32 = arith.constant 0 : i32
    %c0_i32_0 = arith.constant 0 : i32
    return %c0_i32 : i32
  }
  func.func @transform_1(%arg0: i32, %arg1: i32) -> (i32, i32, i32) {
    %c0_i32 = arith.constant 0 : i32
    %c0_i32_0 = arith.constant 0 : i32
    return %arg1, %c0_i32, %arg0 : i32, i32, i32
  }
  func.func @transform_2(%arg0: i32, %arg1: i32) -> (i32, i32) {
    %c0_i32 = arith.constant 0 : i32
    %c0_i32_0 = arith.constant 0 : i32
    return %arg0, %c0_i32 : i32, i32
  }
  func.func @transform_3(%arg0: i32, %arg1: i32) -> (i32, i32) {
    %c0_i32 = arith.constant 0 : i32
    %c0_i32_0 = arith.constant 0 : i32
    return %arg0, %c0_i32 : i32, i32
  }
}

module attributes {stable_mosaic.version = 11 : i64} {
  func.func @_corr_kernel(%arg0: i32, %arg1: i32, %arg2: memref<1x8x256xf32, #tpu.memory_space<vmem>>, %arg3: memref<8x256xf32, #tpu.memory_space<vmem>>, %arg4: memref<1x8x8xf32, #tpu.memory_space<vmem>>, %arg5: memref<8x8xf32, #tpu.memory_space<vmem>>, %arg6: memref<8x1xf32, #tpu.memory_space<vmem>>) attributes {dimension_semantics = [#tpu.dimension_semantics<parallel>, #tpu.dimension_semantics<arbitrary>], iteration_bounds = array<i64: 2, 1>, scalar_prefetch = 0 : i64, scratch_operands = 2 : i64, tpu.core_type = #tpu.core_type<tc>, window_params = [{transform_indices = @transform_0, window_bounds = array<i64: 1, 8, 256>}, {transform_indices = @transform_1, window_bounds = array<i64: 8, 256>}, {transform_indices = @transform_2, window_bounds = array<i64: 1, 8, 8>}]} {
    %c0_i32 = arith.constant 0 : i32
    %0 = arith.cmpi eq, %arg1, %c0_i32 : i32
    %1 = arith.extui %0 : i1 to i32
    %c0_i32_0 = arith.constant 0 : i32
    %2 = arith.cmpi ne, %1, %c0_i32_0 : i32
    scf.if %2 {
      %cst_16 = arith.constant 0.000000e+00 : f32
      %20 = vector.broadcast %cst_16 : f32 to vector<8x8xf32>
      %c0_17 = arith.constant 0 : index
      %c0_18 = arith.constant 0 : index
      %21 = vector.load %arg5[%c0_17, %c0_18] : memref<8x8xf32, #tpu.memory_space<vmem>>, vector<8x8xf32>
      tpu.vector_store %arg5[%c0_17, %c0_18], %20 {strides = array<i32>} : memref<8x8xf32, #tpu.memory_space<vmem>>, vector<8x8xf32>,
      %cst_19 = arith.constant 0.000000e+00 : f32
      %22 = vector.broadcast %cst_19 : f32 to vector<8x1xf32>
      %c0_20 = arith.constant 0 : index
      %c0_21 = arith.constant 0 : index
      %23 = vector.load %arg6[%c0_20, %c0_21] : memref<8x1xf32, #tpu.memory_space<vmem>>, vector<8x1xf32>
      tpu.vector_store %arg6[%c0_20, %c0_21], %22 {strides = array<i32>} : memref<8x1xf32, #tpu.memory_space<vmem>>, vector<8x1xf32>,
    } else {
    }
    %c0 = arith.constant 0 : index
    %c0_1 = arith.constant 0 : index
    %c0_2 = arith.constant 0 : index
    %3 = vector.load %arg2[%c0, %c0_1, %c0_2] : memref<1x8x256xf32, #tpu.memory_space<vmem>>, vector<1x8x256xf32>
    %4 = vector.shape_cast %3 : vector<1x8x256xf32> to vector<8x256xf32>
    %c0_3 = arith.constant 0 : index
    %c0_4 = arith.constant 0 : index
    %5 = vector.load %arg3[%c0_3, %c0_4] : memref<8x256xf32, #tpu.memory_space<vmem>>, vector<8x256xf32>
    %6 = arith.subf %4, %5 : vector<8x256xf32>
    %c0_5 = arith.constant 0 : index
    %c0_6 = arith.constant 0 : index
    %7 = vector.load %arg6[%c0_5, %c0_6] : memref<8x1xf32, #tpu.memory_space<vmem>>, vector<8x1xf32>
    %8 = arith.mulf %6, %6 : vector<8x256xf32>
    %cst = arith.constant dense<0.000000e+00> : vector<8xf32>
    %9 = vector.multi_reduction <add>, %8, %cst [1] : vector<8x256xf32> to vector<8xf32>
    %10 = vector.shape_cast %9 : vector<8xf32> to vector<8x1xf32>
    %11 = arith.addf %7, %10 : vector<8x1xf32>
    %c0_7 = arith.constant 0 : index
    %c0_8 = arith.constant 0 : index
    %12 = vector.load %arg6[%c0_7, %c0_8] : memref<8x1xf32, #tpu.memory_space<vmem>>, vector<8x1xf32>
    tpu.vector_store %arg6[%c0_7, %c0_8], %11 {strides = array<i32>} : memref<8x1xf32, #tpu.memory_space<vmem>>, vector<8x1xf32>,
    %c0_9 = arith.constant 0 : index
    %c0_10 = arith.constant 0 : index
    %13 = vector.load %arg5[%c0_9, %c0_10] : memref<8x8xf32, #tpu.memory_space<vmem>>, vector<8x8xf32>
    %cst_11 = arith.constant dense<0.000000e+00> : vector<8x8xf32>
    %14 = tpu.matmul %6, %6, %cst_11 {dimension_numbers = #tpu.dot_dimension_numbers<[1], [1], [0], [0], [0, 0, 1, 0], [], []>} : vector<8x256xf32>, vector<8x256xf32>, vector<8x8xf32> -> vector<8x8xf32>
    %15 = arith.addf %13, %14 : vector<8x8xf32>
    %c0_12 = arith.constant 0 : index
    %c0_13 = arith.constant 0 : index
    %16 = vector.load %arg5[%c0_12, %c0_13] : memref<8x8xf32, #tpu.memory_space<vmem>>, vector<8x8xf32>
    tpu.vector_store %arg5[%c0_12, %c0_13], %15 {strides = array<i32>} : memref<8x8xf32, #tpu.memory_space<vmem>>, vector<8x8xf32>,
    %c0_i32_14 = arith.constant 0 : i32
    %17 = arith.cmpi eq, %arg1, %c0_i32_14 : i32
    %18 = arith.extui %17 : i1 to i32
    %c0_i32_15 = arith.constant 0 : i32
    %19 = arith.cmpi ne, %18, %c0_i32_15 : i32
    scf.if %19 {
      %c0_16 = arith.constant 0 : index
      %c0_17 = arith.constant 0 : index
      %20 = vector.load %arg6[%c0_16, %c0_17] : memref<8x1xf32, #tpu.memory_space<vmem>>, vector<8x1xf32>
      %21 = math.rsqrt %20 : vector<8x1xf32>
      %c0_18 = arith.constant 0 : index
      %c0_19 = arith.constant 0 : index
      %22 = vector.load %arg5[%c0_18, %c0_19] : memref<8x8xf32, #tpu.memory_space<vmem>>, vector<8x8xf32>
      %23 = tpu.transpose %21, [1, 0] : vector<8x1xf32> -> vector<1x8xf32>
      %24 = vector.broadcast %21 : vector<8x1xf32> to vector<8x8xf32>
      %25 = vector.broadcast %23 : vector<1x8xf32> to vector<8x8xf32>
      %26 = arith.mulf %24, %25 : vector<8x8xf32>
      %27 = arith.mulf %22, %26 : vector<8x8xf32>
      %cst_20 = arith.constant 1.000000e+00 : f32
      %28 = vector.broadcast %cst_20 : f32 to vector<8x8xf32>
      %29 = arith.addf %27, %28 : vector<8x8xf32>
      %c0_21 = arith.constant 0 : index
      %c0_22 = arith.constant 0 : index
      %c0_23 = arith.constant 0 : index
      %30 = vector.load %arg4[%c0_21, %c0_22, %c0_23] : memref<1x8x8xf32, #tpu.memory_space<vmem>>, vector<1x8x8xf32>
      %31 = vector.shape_cast %30 : vector<1x8x8xf32> to vector<8x8xf32>
      %32 = vector.shape_cast %29 : vector<8x8xf32> to vector<1x8x8xf32>
      tpu.vector_store %arg4[%c0_21, %c0_22, %c0_23], %32 {strides = array<i32>} : memref<1x8x8xf32, #tpu.memory_space<vmem>>, vector<1x8x8xf32>,
    } else {
    }
    return
  }
  func.func @transform_0(%arg0: i32, %arg1: i32) -> (i32, i32, i32) {
    %c0_i32 = arith.constant 0 : i32
    %c0_i32_0 = arith.constant 0 : i32
    return %arg0, %c0_i32, %arg1 : i32, i32, i32
  }
  func.func @transform_1(%arg0: i32, %arg1: i32) -> (i32, i32) {
    %c0_i32 = arith.constant 0 : i32
    %c0_i32_0 = arith.constant 0 : i32
    return %c0_i32, %arg1 : i32, i32
  }
  func.func @transform_2(%arg0: i32, %arg1: i32) -> (i32, i32, i32) {
    %c0_i32 = arith.constant 0 : i32
    %c0_i32_0 = arith.constant 0 : i32
    %c0_i32_1 = arith.constant 0 : i32
    return %arg0, %c0_i32, %c0_i32_0 : i32, i32, i32
  }
}

</mosaic_0001>

<llo_original>
// kernel: smg_block_forward.2
$region0: #{smg_block_forward.2}
  #allocation0 [shape = 'u32[]', space=smem, size = 0x4, offset = 0x4, fixed_abs, tag = 'smem constant byte address 0x4 - core index']
  #allocation1 [shape = 'u32[144,128]{1,0:T(1,128)}', space=vmem, size = 0x12000, scoped, tag = 'internal scratch']
  #allocation2 [shape = 'f32[8,256]{1,0:T(8,128)}', space=vmem, size = 0x2000, scoped, tag = 'scratch operand']
  #allocation3 [shape = 'f32[1]{0:T(128)S(6)}', space=smem, size = 0x200, scoped, tag = 'scoped memory for smg_block_forward.2']
  %s0 = inlined_call_operand.<no memory space> [shape: f32[1], index: 0, kind: input, shape index: {}]
  %s1 = inlined_call_operand.vmem [shape: f32[2,8,256], index: 1, kind: input, shape index: {}]
  %s2 = inlined_call_operand.vmem [shape: f32[256,8], index: 2, kind: input, shape index: {}]
  %s3 = inlined_call_operand.vmem [shape: f32[256,8], index: 3, kind: output, shape index: {}]
  %s4 = sld [smem:[#allocation0]]
  $region53: #{smg_block_forward.2} parent=0
    _
  %s6 = ssub.s32 1, %s4
  %s7 = scalar_select 0, %s6, %s4
  %8 = sst [smem:[#allocation3]] %s0
  loop: start=0, step=1, limit=4
  $region2: #{smg_block_forward.2} parent=0 // loop_pre_header
    _
  $region3: #{smg_block_forward.2} parent=0 // loop_header
    %s10 = sphi 0, %s14
    %p11 = scmp.ge.s32.totalorder %s10, 4
    %s17 = sphi 0, %s29
    %s18 = sphi 0, %s25
    %s19 = sphi 0, %s17
    %s20 = sphi 0, %s18
    %s21 = sphi 0, %s19
    %s22 = sphi 0, %s20
    %s30 = sphi 0, %s30
    %s32 = sphi 0, %s30
    %s33 = sphi 0, %s32
    %s47 = sphi 0, %s33
    %s55 = sphi 0, %s57
    %s58 = sphi 0, %s55
    %s59 = sphi 0, %s58
    %s75 = sphi 0, %s59
    %s81 = sphi 0, %s83
    %s84 = sphi 0, %s81
    %s85 = sphi 0, %s84
    %s101 = sphi 0, %s85
    %s107 = sphi 0, %s109
    %s110 = sphi 0, %s107
    %s111 = sphi 0, %s110
    %s127 = sphi 0, %s111
  $region4: #{smg_block_forward.2} parent=0 // loop_header_branch
    %13 = sbr.rel (%p11) target = $region8
  $region5: #{smg_block_forward.2} parent=0 // loop_body
    %s15 = ssub.s32 %s10, 1
    %s16 = ssub.s32 %s10, 2
    %s23 = sadd.s32 1, %s18
    %p24 = scmp.ge.s32.totalorder %s23, 2
    %s25 = scalar_select %p24, 0, %s23
    %s26 = sadd.s32 1, %s17
    %s27 = scalar_select %p24, %s26, %s17
    %p28 = scmp.ge.s32.totalorder %s27, 1
    %s29 = scalar_select %p28, 0, %s27
    %s31 = sadd.s32 %s30, 1
    %p34 = scmp.eq.s32.totalorder %s10, 1
    %p35 = scmp.ne.s32.totalorder %s30, %s32
    %p36 = scmp.eq.s32.totalorder %s10, 0
    %p37 = por %p35, %p36
    %p38 = scmp.ne.s32.totalorder %s30, %s32
    %p39 = scmp.eq.s32.totalorder %s15, 1
    %p40 = por %p38, %p39
    %p41 = scmp.ne.s32.totalorder %s32, %s33
    %p42 = scmp.eq.s32.totalorder %s15, 0
    %p43 = por %p41, %p42
    %p44 = scmp.ne.s32.totalorder %s32, %s33
    %p45 = scmp.eq.s32.totalorder %s16, 1
    %p46 = por %p44, %p45
    %p48 = scmp.ne.s32.totalorder %s33, %s47
    %p49 = scmp.eq.s32.totalorder %s16, 0
    %p50 = por %p48, %p49
    %s51 = ssub.s32 %s18, %s25
    %s52 = ssub.s32 %s17, %s29
    %s53 = sor.u32 %s51, %s52
    %p54 = scmp.eq.s32.totalorder %s53, 0
    %s56 = sadd.s32 %s55, 1
    %s57 = scalar_select %p54, %s55, %s56
    %p60 = pneg %p54
    %p61 = scmp.eq.s32.totalorder %s10, 1
    %p62 = por %p60, %p61
    %p63 = scmp.ne.s32.totalorder %s55, %s58
    %p64 = scmp.eq.s32.totalorder %s10, 0
    %p65 = por %p63, %p64
    %p66 = scmp.ne.s32.totalorder %s55, %s58
    %p67 = scmp.eq.s32.totalorder %s15, 1
    %p68 = por %p66, %p67
    %p69 = scmp.ne.s32.totalorder %s58, %s59
    %p70 = scmp.eq.s32.totalorder %s15, 0
    %p71 = por %p69, %p70
    %p72 = scmp.ne.s32.totalorder %s58, %s59
    %p73 = scmp.eq.s32.totalorder %s16, 1
    %p74 = por %p72, %p73
    %p76 = scmp.ne.s32.totalorder %s59, %s75
    %p77 = scmp.eq.s32.totalorder %s16, 0
    %p78 = por %p76, %p77
    %s79 = ssub.s32 %s17, %s29
    %p80 = scmp.eq.s32.totalorder %s79, 0
    %s82 = sadd.s32 %s81, 1
    %s83 = scalar_select %p80, %s81, %s82
    %p86 = pneg %p80
    %p87 = scmp.eq.s32.totalorder %s10, 1
    %p88 = por %p86, %p87
    %p89 = scmp.ne.s32.totalorder %s81, %s84
    %p90 = scmp.eq.s32.totalorder %s10, 0
    %p91 = por %p89, %p90
    %p92 = scmp.ne.s32.totalorder %s81, %s84
    %p93 = scmp.eq.s32.totalorder %s15, 1
    %p94 = por %p92, %p93
    %p95 = scmp.ne.s32.totalorder %s84, %s85
    %p96 = scmp.eq.s32.totalorder %s15, 0
    %p97 = por %p95, %p96
    %p98 = scmp.ne.s32.totalorder %s84, %s85
    %p99 = scmp.eq.s32.totalorder %s16, 1
    %p100 = por %p98, %p99
    %p102 = scmp.ne.s32.totalorder %s85, %s101
    %p103 = scmp.eq.s32.totalorder %s16, 0
    %p104 = por %p102, %p103
    %s105 = ssub.s32 %s17, %s29
    %p106 = scmp.eq.s32.totalorder %s105, 0
    %s108 = sadd.s32 %s107, 1
    %s109 = scalar_select %p106, %s107, %s108
    %p112 = pneg %p106
    %p113 = scmp.eq.s32.totalorder %s10, 1
    %p114 = por %p112, %p113
    %p115 = scmp.ne.s32.totalorder %s107, %s110
    %p116 = scmp.eq.s32.totalorder %s10, 0
    %p117 = por %p115, %p116
    %p118 = scmp.ne.s32.totalorder %s107, %s110
    %p119 = scmp.eq.s32.totalorder %s15, 1
    %p120 = por %p118, %p119
    %p121 = scmp.ne.s32.totalorder %s110, %s111
    %p122 = scmp.eq.s32.totalorder %s15, 0
    %p123 = por %p121, %p122
    %p124 = scmp.ne.s32.totalorder %s110, %s111
    %p125 = scmp.eq.s32.totalorder %s16, 1
    %p126 = por %p124, %p125
    %p128 = scmp.ne.s32.totalorder %s111, %s127
    %p129 = scmp.eq.s32.totalorder %s16, 0
    %p130 = por %p128, %p129
    %p131 = scmp.le.s32.totalorder 1, %s10
    %p132 = scmp.lt.s32.totalorder %s10, 3
    %p133 = pnand %p131, %p132
    %p134 = pneg %p133
    // Predicated region
    $region9: #{smg_block_forward.2} parent=5 // pred_check
      _
    $region10: #{smg_block_forward.2} parent=5 // pred_check_branch
      %136 = sbr.rel (%p133) target = $region12
    $region11: #{smg_block_forward.2} parent=5 // pred_region
      %s137 = ssub.s32 %s10, 1
      // Predicated region
      $region13: #{smg_block_forward.2} parent=11 // pred_check
        %p138 = pneg %p43
      $region14: #{smg_block_forward.2} parent=11 // pred_check_branch
        %140 = sbr.rel (%p138) target = $region16
      $region15: #{smg_block_forward.2} parent=11 // pred_region
        _
      $region16: #{smg_block_forward.2} parent=11 // pred_fallthru
        _
      // Predicated region
      $region17: #{smg_block_forward.2} parent=11 // pred_check
        %p141 = pneg %p97
      $region18: #{smg_block_forward.2} parent=11 // pred_check_branch
        %143 = sbr.rel (%p141) target = $region20
      $region19: #{smg_block_forward.2} parent=11 // pred_region
        %s144 = smul.u32 32, %s19
        %p145 = scmp.lt.s32.totalorder %s144, 31
        %s146 = scalar_select %p145, %s144, 31
        %s147 = smul.addr %s146, 8
        %s148 = scalar_lea.vmem %s2, %s147
        %s149 = smul.u32 32, %s19
      $region20: #{smg_block_forward.2} parent=11 // pred_fallthru
        _
    $region12: #{smg_block_forward.2} parent=5 // pred_fallthru
      _
    %p150 = scmp.lt.s32.totalorder %s10, 2
    // Predicated region
    $region21: #{smg_block_forward.2} parent=5 // pred_check
      %p151 = pneg %p150
    $region22: #{smg_block_forward.2} parent=5 // pred_check_branch
      %153 = sbr.rel (%p151) target = $region24
    $region23: #{smg_block_forward.2} parent=5 // pred_region
      // Predicated region
      $region25: #{smg_block_forward.2} parent=23 // pred_check
        %p154 = pneg %p65
      $region26: #{smg_block_forward.2} parent=23 // pred_check_branch
        %156 = sbr.rel (%p154) target = $region28
      $region27: #{smg_block_forward.2} parent=23 // pred_region
        %s157 = smul.u32 2, %s17
        %p158 = scmp.lt.s32.totalorder %s18, 1
        %s159 = scalar_select %p158, %s18, 1
        %p160 = scmp.lt.s32.totalorder %s157, 1
        %s161 = scalar_select %p160, %s157, 1
        %s162 = smul.addr %s159, 2
        %s163 = sadd.s32 %s161, %s162
        %s164 = smul.addr %s163, 8
        %s165 = scalar_lea.vmem %s1, %s164
        %s166 = smul.u32 2, %s17
      $region28: #{smg_block_forward.2} parent=23 // pred_fallthru
        _
    $region24: #{smg_block_forward.2} parent=5 // pred_fallthru
      _
    %p167 = scmp.le.s32.totalorder 1, %s10
    %p168 = scmp.lt.s32.totalorder %s10, 3
    %p169 = pnand %p167, %p168
    %p170 = pneg %p169
    // Predicated region
    $region29: #{smg_block_forward.2} parent=5 // pred_check
      _
    $region30: #{smg_block_forward.2} parent=5 // pred_check_branch
      %172 = sbr.rel (%p169) target = $region32
    $region31: #{smg_block_forward.2} parent=5 // pred_region
      %s173 = ssub.s32 %s10, 1
      %p174 = pneg %p43
      %p175 = pneg %p40
      %s176 = smul.u32 2, %s19
      %p177 = scmp.lt.s32.totalorder %s20, 1
      %s178 = scalar_select %p177, %s20, 1
      %p179 = scmp.lt.s32.totalorder %s176, 1
      %s180 = scalar_select %p179, %s176, 1
      %s181 = smul.addr %s178, 2
      %s182 = sadd.s32 %s180, %s181
      %s183 = smul.addr %s182, 8
      %s184 = scalar_lea.vmem %s1, %s183
      %p185 = pneg %p71
      %p186 = pneg %p68
      %s187 = smul.u32 32, %s19
      %p188 = scmp.lt.s32.totalorder %s187, 31
      %s189 = scalar_select %p188, %s187, 31
      %s190 = smul.addr %s189, 8
      %s191 = scalar_lea.vmem %s2, %s190
      %p192 = pneg %p97
      %p193 = pneg %p94
      %p194 = pneg %p123
      %p195 = pneg %p120
      %s196 = smul.u32 32, %s19
      %p197 = scmp.lt.s32.totalorder %s196, 31
      %s198 = scalar_select %p197, %s196, 31
      %s199 = smul.addr %s198, 8
      %s200 = scalar_lea.vmem %s3, %s199
      %s201 = smul.u32 2, %s19
      %p202 = scmp.lt.s32.totalorder %s20, 1
      %s203 = scalar_select %p202, %s20, 1
      %p204 = scmp.lt.s32.totalorder %s201, 1
      %s205 = scalar_select %p204, %s201, 1
      %s206 = smul.addr %s203, 2
      %s207 = sadd.s32 %s205, %s206
      %s208 = smul.addr %s207, 8
      %s209 = scalar_lea.vmem %s1, %s208
      %s210 = smul.u32 2, %s19
      %s211 = smul.u32 32, %s19
      %p212 = scmp.lt.s32.totalorder %s211, 31
      %s213 = scalar_select %p212, %s211, 31
      %s214 = smul.addr %s213, 8
      %s215 = scalar_lea.vmem %s2, %s214
      %s216 = smul.u32 32, %s19
      %s217 = smul.u32 32, %s19
      %p218 = scmp.lt.s32.totalorder %s217, 31
      %s219 = scalar_select %p218, %s217, 31
      %s220 = smul.addr %s219, 8
      %s221 = scalar_lea.vmem %s3, %s220
      %s222 = smul.u32 32, %s19
      %p223 = scmp.eq.s32.totalorder %s20, 0
      // Predicated region
      $region33: #{smg_block_forward.2} parent=31 // pred_check
        %p224 = pneg %p223
      $region34: #{smg_block_forward.2} parent=31 // pred_check_branch
        %226 = sbr.rel (%p224) target = $region36
      $region35: #{smg_block_forward.2} parent=31 // pred_region
        %227 = vst [vmem:[#allocation2] sm:$0xff] 0.0
        %228 = vst [vmem:[#allocation2 + $0x8] sm:$0xff] 0.0
      $region36: #{smg_block_forward.2} parent=31 // pred_fallthru
        _
      %v229 = vld [vmem:[#allocation2] sm:$0xff]
      %v230 = vld [vmem:[#allocation2 + $0x8] sm:$0xff]
      %v231 = vld [vmem:[%s209] sm:$0xff]
      %v232 = vld [vmem:[%s209 + $0x8] sm:$0xff]
      %v233 = vadd.f32 %v229, %v231
      %v234 = vadd.f32 %v230, %v232
      %235 = vst [vmem:[#allocation2] sm:$0xff] %v233
      %236 = vst [vmem:[#allocation2 + $0x8] sm:$0xff] %v234
      %p237 = scmp.eq.s32.totalorder %s20, 1
      // Predicated region
      $region37: #{smg_block_forward.2} parent=31 // pred_check
        %p238 = pneg %p237
      $region38: #{smg_block_forward.2} parent=31 // pred_check_branch
        %240 = sbr.rel (%p238) target = $region40
      $region39: #{smg_block_forward.2} parent=31 // pred_region
        %s241 = sld [smem:[#allocation3]]
        %v242 = vld [vmem:[#allocation2] sm:$0xff]
        %v243 = vld [vmem:[#allocation2 + $0x8] sm:$0xff]
        %244 = vxpose.xlu0.b32.start [1/16] %v242, 128
        %245 = vxpose.xlu0.b32.cont [2/16] 0.0, 128
        %246 = vxpose.xlu0.b32.cont [3/16] 0.0, 128
        %247 = vxpose.xlu0.b32.cont [4/16] 0.0, 128
        %248 = vxpose.xlu0.b32.cont [5/16] 0.0, 128
        %249 = vxpose.xlu0.b32.cont [6/16] 0.0, 128
        %250 = vxpose.xlu0.b32.cont [7/16] 0.0, 128
        %251 = vxpose.xlu0.b32.cont [8/16] 0.0, 128
        %252 = vxpose.xlu0.b32.cont [9/16] 0.0, 128
        %253 = vxpose.xlu0.b32.cont [10/16] 0.0, 128
        %254 = vxpose.xlu0.b32.cont [11/16] 0.0, 128
        %255 = vxpose.xlu0.b32.cont [12/16] 0.0, 128
        %256 = vxpose.xlu0.b32.cont [13/16] 0.0, 128
        %257 = vxpose.xlu0.b32.cont [14/16] 0.0, 128
        %258 = vxpose.xlu0.b32.cont [15/16] 0.0, 128
        %259 = vxpose.xlu0.b32.end [16/16] 0.0, 128
        %v260 = vpop.trf.xlu0
        %v261 = vpop.trf.xlu0
        %v262 = vpop.trf.xlu0
        %v263 = vpop.trf.xlu0
        %v264 = vpop.trf.xlu0
        %v265 = vpop.trf.xlu0
        %v266 = vpop.trf.xlu0
        %v267 = vpop.trf.xlu0
        %v268 = vpop.trf.xlu0
        %v269 = vpop.trf.xlu0
        %v270 = vpop.trf.xlu0
        %v271 = vpop.trf.xlu0
        %v272 = vpop.trf.xlu0
        %v273 = vpop.trf.xlu0
        %v274 = vpop.trf.xlu0
        %v275 = vpop.trf.xlu0
        %276 = vxpose.xlu0.b32.start [1/16] %v243, 128
        %277 = vxpose.xlu0.b32.cont [2/16] 0.0, 128
        %278 = vxpose.xlu0.b32.cont [3/16] 0.0, 128
        %279 = vxpose.xlu0.b32.cont [4/16] 0.0, 128
        %280 = vxpose.xlu0.b32.cont [5/16] 0.0, 128
        %281 = vxpose.xlu0.b32.cont [6/16] 0.0, 128
        %282 = vxpose.xlu0.b32.cont [7/16] 0.0, 128
        %283 = vxpose.xlu0.b32.cont [8/16] 0.0, 128
        %284 = vxpose.xlu0.b32.cont [9/16] 0.0, 128
        %285 = vxpose.xlu0.b32.cont [10/16] 0.0, 128
        %286 = vxpose.xlu0.b32.cont [11/16] 0.0, 128
        %287 = vxpose.xlu0.b32.cont [12/16] 0.0, 128
        %288 = vxpose.xlu0.b32.cont [13/16] 0.0, 128
        %289 = vxpose.xlu0.b32.cont [14/16] 0.0, 128
        %290 = vxpose.xlu0.b32.cont [15/16] 0.0, 128
        %291 = vxpose.xlu0.b32.end [16/16] 0.0, 128
        %v292 = vpop.trf.xlu0
        %v293 = vpop.trf.xlu0
        %v294 = vpop.trf.xlu0
        %v295 = vpop.trf.xlu0
        %v296 = vpop.trf.xlu0
        %v297 = vpop.trf.xlu0
        %v298 = vpop.trf.xlu0
        %v299 = vpop.trf.xlu0
        %v300 = vpop.trf.xlu0
        %v301 = vpop.trf.xlu0
        %v302 = vpop.trf.xlu0
        %v303 = vpop.trf.xlu0
        %v304 = vpop.trf.xlu0
        %v305 = vpop.trf.xlu0
        %v306 = vpop.trf.xlu0
        %v307 = vpop.trf.xlu0
        %v308 = vmul.f32 %v260, 0.5
        %v309 = vmul.f32 %v261, 0.5
        %v310 = vmul.f32 %v262, 0.5
        %v311 = vmul.f32 %v263, 0.5
        %v312 = vmul.f32 %v264, 0.5
        %v313 = vmul.f32 %v265, 0.5
        %v314 = vmul.f32 %v266, 0.5
        %v315 = vmul.f32 %v267, 0.5
        %v316 = vmul.f32 %v268, 0.5
        %v317 = vmul.f32 %v269, 0.5
        %v318 = vmul.f32 %v270, 0.5
        %v319 = vmul.f32 %v271, 0.5
        %v320 = vmul.f32 %v272, 0.5
        %v321 = vmul.f32 %v273, 0.5
        %v322 = vmul.f32 %v274, 0.5
        %v323 = vmul.f32 %v275, 0.5
        %v324 = vmul.f32 %v292, 0.5
        %v325 = vmul.f32 %v293, 0.5
        %v326 = vmul.f32 %v294, 0.5
        %v327 = vmul.f32 %v295, 0.5
        %v328 = vmul.f32 %v296, 0.5
        %v329 = vmul.f32 %v297, 0.5
        %v330 = vmul.f32 %v298, 0.5
        %v331 = vmul.f32 %v299, 0.5
        %v332 = vmul.f32 %v300, 0.5
        %v333 = vmul.f32 %v301, 0.5
        %v334 = vmul.f32 %v302, 0.5
        %v335 = vmul.f32 %v303, 0.5
        %v336 = vmul.f32 %v304, 0.5
        %v337 = vmul.f32 %v305, 0.5
        %v338 = vmul.f32 %v306, 0.5
        %v339 = vmul.f32 %v307, 0.5
        %s340 = ssub.f32 1.0, %s241
        %v341 = vstv %s340
        %v342 = vmul.f32 %v341, %v308
        %v343 = vmul.f32 %v341, %v309
        %v344 = vmul.f32 %v341, %v310
        %v345 = vmul.f32 %v341, %v311
        %v346 = vmul.f32 %v341, %v312
        %v347 = vmul.f32 %v341, %v313
        %v348 = vmul.f32 %v341, %v314
        %v349 = vmul.f32 %v341, %v315
        %v350 = vmul.f32 %v341, %v316
        %v351 = vmul.f32 %v341, %v317
        %v352 = vmul.f32 %v341, %v318
        %v353 = vmul.f32 %v341, %v319
        %v354 = vmul.f32 %v341, %v320
        %v355 = vmul.f32 %v341, %v321
        %v356 = vmul.f32 %v341, %v322
        %v357 = vmul.f32 %v341, %v323
        %v358 = vmul.f32 %v341, %v324
        %v359 = vmul.f32 %v341, %v325
        %v360 = vmul.f32 %v341, %v326
        %v361 = vmul.f32 %v341, %v327
        %v362 = vmul.f32 %v341, %v328
        %v363 = vmul.f32 %v341, %v329
        %v364 = vmul.f32 %v341, %v330
        %v365 = vmul.f32 %v341, %v331
        %v366 = vmul.f32 %v341, %v332
        %v367 = vmul.f32 %v341, %v333
        %v368 = vmul.f32 %v341, %v334
        %v369 = vmul.f32 %v341, %v335
        %v370 = vmul.f32 %v341, %v336
        %v371 = vmul.f32 %v341, %v337
        %v372 = vmul.f32 %v341, %v338
        %v373 = vmul.f32 %v341, %v339
        %v374 = vld [vmem:[%s215] sm:$0xff]
        %v375 = vld [vmem:[%s215 + $0x8] sm:$0xff]
        %v376 = vld [vmem:[%s215 + $0x10] sm:$0xff]
        %v377 = vld [vmem:[%s215 + $0x18] sm:$0xff]
        %v378 = vld [vmem:[%s215 + $0x20] sm:$0xff]
        %v379 = vld [vmem:[%s215 + $0x28] sm:$0xff]
        %v380 = vld [vmem:[%s215 + $0x30] sm:$0xff]
        %v381 = vld [vmem:[%s215 + $0x38] sm:$0xff]
        %v382 = vld [vmem:[%s215 + $0x40] sm:$0xff]
        %v383 = vld [vmem:[%s215 + $0x48] sm:$0xff]
        %v384 = vld [vmem:[%s215 + $0x50] sm:$0xff]
        %v385 = vld [vmem:[%s215 + $0x58] sm:$0xff]
        %v386 = vld [vmem:[%s215 + $0x60] sm:$0xff]
        %v387 = vld [vmem:[%s215 + $0x68] sm:$0xff]
        %v388 = vld [vmem:[%s215 + $0x70] sm:$0xff]
        %v389 = vld [vmem:[%s215 + $0x78] sm:$0xff]
        %v390 = vld [vmem:[%s215 + $0x80] sm:$0xff]
        %v391 = vld [vmem:[%s215 + $0x88] sm:$0xff]
        %v392 = vld [vmem:[%s215 + $0x90] sm:$0xff]
        %v393 = vld [vmem:[%s215 + $0x98] sm:$0xff]
        %v394 = vld [vmem:[%s215 + $0xa0] sm:$0xff]
        %v395 = vld [vmem:[%s215 + $0xa8] sm:$0xff]
        %v396 = vld [vmem:[%s215 + $0xb0] sm:$0xff]
        %v397 = vld [vmem:[%s215 + $0xb8] sm:$0xff]
        %v398 = vld [vmem:[%s215 + $0xc0] sm:$0xff]
        %v399 = vld [vmem:[%s215 + $0xc8] sm:$0xff]
        %v400 = vld [vmem:[%s215 + $0xd0] sm:$0xff]
        %v401 = vld [vmem:[%s215 + $0xd8] sm:$0xff]
        %v402 = vld [vmem:[%s215 + $0xe0] sm:$0xff]
        %v403 = vld [vmem:[%s215 + $0xe8] sm:$0xff]
        %v404 = vld [vmem:[%s215 + $0xf0] sm:$0xff]
        %v405 = vld [vmem:[%s215 + $0xf8] sm:$0xff]
        %v406 = vstv %s241
        %v407 = vmul.f32 %v406, %v374
        %v408 = vmul.f32 %v406, %v375
        %v409 = vmul.f32 %v406, %v376
        %v410 = vmul.f32 %v406, %v377
        %v411 = vmul.f32 %v406, %v378
        %v412 = vmul.f32 %v406, %v379
        %v413 = vmul.f32 %v406, %v380
        %v414 = vmul.f32 %v406, %v381
        %v415 = vmul.f32 %v406, %v382
        %v416 = vmul.f32 %v406, %v383
        %v417 = vmul.f32 %v406, %v384
        %v418 = vmul.f32 %v406, %v385
        %v419 = vmul.f32 %v406, %v386
        %v420 = vmul.f32 %v406, %v387
        %v421 = vmul.f32 %v406, %v388
        %v422 = vmul.f32 %v406, %v389
        %v423 = vmul.f32 %v406, %v390
        %v424 = vmul.f32 %v406, %v391
        %v425 = vmul.f32 %v406, %v392
        %v426 = vmul.f32 %v406, %v393
        %v427 = vmul.f32 %v406, %v394
        %v428 = vmul.f32 %v406, %v395
        %v429 = vmul.f32 %v406, %v396
        %v430 = vmul.f32 %v406, %v397
        %v431 = vmul.f32 %v406, %v398
        %v432 = vmul.f32 %v406, %v399
        %v433 = vmul.f32 %v406, %v400
        %v434 = vmul.f32 %v406, %v401
        %v435 = vmul.f32 %v406, %v402
        %v436 = vmul.f32 %v406, %v403
        %v437 = vmul.f32 %v406, %v404
        %v438 = vmul.f32 %v406, %v405
        %v439 = vadd.f32 %v342, %v407
        %v440 = vadd.f32 %v343, %v408
        %v441 = vadd.f32 %v344, %v409
        %v442 = vadd.f32 %v345, %v410
        %v443 = vadd.f32 %v346, %v411
        %v444 = vadd.f32 %v347, %v412
        %v445 = vadd.f32 %v348, %v413
        %v446 = vadd.f32 %v349, %v414
        %v447 = vadd.f32 %v350, %v415
        %v448 = vadd.f32 %v351, %v416
        %v449 = vadd.f32 %v352, %v417
        %v450 = vadd.f32 %v353, %v418
        %v451 = vadd.f32 %v354, %v419
        %v452 = vadd.f32 %v355, %v420
        %v453 = vadd.f32 %v356, %v421
        %v454 = vadd.f32 %v357, %v422
        %v455 = vadd.f32 %v358, %v423
        %v456 = vadd.f32 %v359, %v424
        %v457 = vadd.f32 %v360, %v425
        %v458 = vadd.f32 %v361, %v426
        %v459 = vadd.f32 %v362, %v427
        %v460 = vadd.f32 %v363, %v428
        %v461 = vadd.f32 %v364, %v429
        %v462 = vadd.f32 %v365, %v430
        %v463 = vadd.f32 %v366, %v431
        %v464 = vadd.f32 %v367, %v432
        %v465 = vadd.f32 %v368, %v433
        %v466 = vadd.f32 %v369, %v434
        %v467 = vadd.f32 %v370, %v435
        %v468 = vadd.f32 %v371, %v436
        %v469 = vadd.f32 %v372, %v437
        %v470 = vadd.f32 %v373, %v438
        %vm471 = vcmask 64512
        %472 = vst.msk [vmem:[%s221] sm:$0xff] %vm471, %v439
        %473 = vst.msk [vmem:[%s221 + $0x8] sm:$0xff] %vm471, %v440
        %474 = vst.msk [vmem:[%s221 + $0x10] sm:$0xff] %vm471, %v441
        %475 = vst.msk [vmem:[%s221 + $0x18] sm:$0xff] %vm471, %v442
        %476 = vst.msk [vmem:[%s221 + $0x20] sm:$0xff] %vm471, %v443
        %477 = vst.msk [vmem:[%s221 + $0x28] sm:$0xff] %vm471, %v444
        %478 = vst.msk [vmem:[%s221 + $0x30] sm:$0xff] %vm471, %v445
        %479 = vst.msk [vmem:[%s221 + $0x38] sm:$0xff] %vm471, %v446
        %480 = vst.msk [vmem:[%s221 + $0x40] sm:$0xff] %vm471, %v447
        %481 = vst.msk [vmem:[%s221 + $0x48] sm:$0xff] %vm471, %v448
        %482 = vst.msk [vmem:[%s221 + $0x50] sm:$0xff] %vm471, %v449
        %483 = vst.msk [vmem:[%s221 + $0x58] sm:$0xff] %vm471, %v450
        %484 = vst.msk [vmem:[%s221 + $0x60] sm:$0xff] %vm471, %v451
        %485 = vst.msk [vmem:[%s221 + $0x68] sm:$0xff] %vm471, %v452
        %486 = vst.msk [vmem:[%s221 + $0x70] sm:$0xff] %vm471, %v453
        %487 = vst.msk [vmem:[%s221 + $0x78] sm:$0xff] %vm471, %v454
        %488 = vst.msk [vmem:[%s221 + $0x80] sm:$0xff] %vm471, %v455
        %489 = vst.msk [vmem:[%s221 + $0x88] sm:$0xff] %vm471, %v456
        %490 = vst.msk [vmem:[%s221 + $0x90] sm:$0xff] %vm471, %v457
        %491 = vst.msk [vmem:[%s221 + $0x98] sm:$0xff] %vm471, %v458
        %492 = vst.msk [vmem:[%s221 + $0xa0] sm:$0xff] %vm471, %v459
        %493 = vst.msk [vmem:[%s221 + $0xa8] sm:$0xff] %vm471, %v460
        %494 = vst.msk [vmem:[%s221 + $0xb0] sm:$0xff] %vm471, %v461
        %495 = vst.msk [vmem:[%s221 + $0xb8] sm:$0xff] %vm471, %v462
        %496 = vst.msk [vmem:[%s221 + $0xc0] sm:$0xff] %vm471, %v463
        %497 = vst.msk [vmem:[%s221 + $0xc8] sm:$0xff] %vm471, %v464
        %498 = vst.msk [vmem:[%s221 + $0xd0] sm:$0xff] %vm471, %v465
        %499 = vst.msk [vmem:[%s221 + $0xd8] sm:$0xff] %vm471, %v466
        %500 = vst.msk [vmem:[%s221 + $0xe0] sm:$0xff] %vm471, %v467
        %501 = vst.msk [vmem:[%s221 + $0xe8] sm:$0xff] %vm471, %v468
        %502 = vst.msk [vmem:[%s221 + $0xf0] sm:$0xff] %vm471, %v469
        %503 = vst.msk [vmem:[%s221 + $0xf8] sm:$0xff] %vm471, %v470
      $region40: #{smg_block_forward.2} parent=31 // pred_fallthru
        _
      %s504 = smul.u32 32, %s19
      %p505 = scmp.lt.s32.totalorder %s504, 31
      %s506 = scalar_select %p505, %s504, 31
      %s507 = smul.addr %s506, 8
      %s508 = scalar_lea.vmem %s3, %s507
      // Predicated region
      $region41: #{smg_block_forward.2} parent=31 // pred_check
        %p509 = pneg %p120
      $region42: #{smg_block_forward.2} parent=31 // pred_check_branch
        %511 = sbr.rel (%p509) target = $region44
      $region43: #{smg_block_forward.2} parent=31 // pred_region
        %s512 = smul.u32 32, %s19
      $region44: #{smg_block_forward.2} parent=31 // pred_fallthru
        _
      // Predicated region
      $region45: #{smg_block_forward.2} parent=31 // pred_check
        %p513 = pneg %p120
      $region46: #{smg_block_forward.2} parent=31 // pred_check_branch
        %515 = sbr.rel (%p513) target = $region48
      $region47: #{smg_block_forward.2} parent=31 // pred_region
        %s516 = smul.u32 32, %s19
        %p517 = scmp.lt.s32.totalorder %s516, 31
        %s518 = scalar_select %p517, %s516, 31
        %s519 = smul.addr %s518, 8
        %s520 = scalar_lea.vmem %s3, %s519
      $region48: #{smg_block_forward.2} parent=31 // pred_fallthru
        _
    $region32: #{smg_block_forward.2} parent=5 // pred_fallthru
      _
    %p521 = scmp.le.s32.totalorder 2, %s10
    // Predicated region
    $region49: #{smg_block_forward.2} parent=5 // pred_check
      %p522 = pneg %p521
    $region50: #{smg_block_forward.2} parent=5 // pred_check_branch
      %524 = sbr.rel (%p522) target = $region52
    $region51: #{smg_block_forward.2} parent=5 // pred_region
      %s525 = ssub.s32 %s10, 2
    $region52: #{smg_block_forward.2} parent=5 // pred_fallthru
      _
  $region6: #{smg_block_forward.2} parent=0 // loop_footer
    %s14 = sadd.s32 1, %s10
  $region7: #{smg_block_forward.2} parent=0 // loop_footer_branch
    %9 = sbr.rel target = $region3
  $region8: #{smg_block_forward.2} parent=0 // loop_exit
    _

// kernel: smg_block_forward.3
$region0: #{smg_block_forward.3}
  #allocation0 [shape = 'u32[]', space=smem, size = 0x4, offset = 0x4, fixed_abs, tag = 'smem constant byte address 0x4 - core index']
  #allocation1 [shape = 'u32[144,128]{1,0:T(1,128)}', space=vmem, size = 0x12000, scoped, tag = 'internal scratch']
  #allocation2 [shape = 'f32[8,8]{1,0:T(8,128)}', space=vmem, size = 0x1000, scoped, tag = 'scratch operand']
  #allocation3 [shape = 'f32[8,1]{1,0:T(8,128)}', space=vmem, size = 0x1000, scoped, tag = 'scratch operand']
  %s0 = inlined_call_operand.vmem [shape: f32[2,8,256], index: 0, kind: input, shape index: {}]
  %s1 = inlined_call_operand.vmem [shape: f32[8,256], index: 1, kind: input, shape index: {}]
  %s2 = inlined_call_operand.hbm [shape: f32[2,8,8], index: 2, kind: output, shape index: {}]
  %s3 = sld [smem:[#allocation0]]
  $region49: #{smg_block_forward.3} parent=0
    _
  %s5 = ssub.s32 1, %s3
  %s6 = scalar_select 0, %s5, %s3
  $region1: #{smg_block_forward.3} parent=0
    #allocation4 [shape = 'u8[8192]{0}', space=vmem, size = 0x2000, scoped, tag = 'output window, operand 0']
    #allocation5 [shape = 's32[2]{0}', space=sflag, size = 0x8, scoped, tag = 'scoped memory for smg_block_forward.3']
    %7 = vsyncpa [#allocation5], 0
    %s8 = scalar_lea.sflag [#allocation5], 1
    %9 = vsyncpa %s8, 0
    loop: start=0, step=1, limit=4
    $region2: #{smg_block_forward.3} parent=1 // loop_pre_header
      _
    $region3: #{smg_block_forward.3} parent=1 // loop_header
      %s11 = sphi 0, %s15
      %p12 = scmp.ge.s32.totalorder %s11, 4
      %s18 = sphi 0, %s30
      %s19 = sphi 0, %s26
      %s20 = sphi 0, %s18
      %s21 = sphi 0, %s19
      %s22 = sphi 0, %s20
      %s23 = sphi 0, %s21
      %s35 = sphi 0, %s37
      %s38 = sphi 0, %s35
      %s39 = sphi 0, %s38
      %s55 = sphi 0, %s39
      %s61 = sphi 0, %s63
      %s64 = sphi 0, %s61
      %s65 = sphi 0, %s64
      %s81 = sphi 0, %s65
      %s87 = sphi 0, %s89
      %s90 = sphi 0, %s87
      %s91 = sphi 0, %s90
      %s107 = sphi 0, %s91
    $region4: #{smg_block_forward.3} parent=1 // loop_header_branch
      %14 = sbr.rel (%p12) target = $region8
    $region5: #{smg_block_forward.3} parent=1 // loop_body
      %s16 = ssub.s32 %s11, 1
      %s17 = ssub.s32 %s11, 2
      %s24 = sadd.s32 1, %s19
      %p25 = scmp.ge.s32.totalorder %s24, 1
      %s26 = scalar_select %p25, 0, %s24
      %s27 = sadd.s32 1, %s18
      %s28 = scalar_select %p25, %s27, %s18
      %p29 = scmp.ge.s32.totalorder %s28, 2
      %s30 = scalar_select %p29, 0, %s28
      %s31 = ssub.s32 %s18, %s30
      %s32 = ssub.s32 %s19, %s26
      %s33 = sor.u32 %s31, %s32
      %p34 = scmp.eq.s32.totalorder %s33, 0
      %s36 = sadd.s32 %s35, 1
      %s37 = scalar_select %p34, %s35, %s36
      %p40 = pneg %p34
      %p41 = scmp.eq.s32.totalorder %s11, 1
      %p42 = por %p40, %p41
      %p43 = scmp.ne.s32.totalorder %s35, %s38
      %p44 = scmp.eq.s32.totalorder %s11, 0
      %p45 = por %p43, %p44
      %p46 = scmp.ne.s32.totalorder %s35, %s38
      %p47 = scmp.eq.s32.totalorder %s16, 1
      %p48 = por %p46, %p47
      %p49 = scmp.ne.s32.totalorder %s38, %s39
      %p50 = scmp.eq.s32.totalorder %s16, 0
      %p51 = por %p49, %p50
      %p52 = scmp.ne.s32.totalorder %s38, %s39
      %p53 = scmp.eq.s32.totalorder %s17, 1
      %p54 = por %p52, %p53
      %p56 = scmp.ne.s32.totalorder %s39, %s55
      %p57 = scmp.eq.s32.totalorder %s17, 0
      %p58 = por %p56, %p57
      %s59 = ssub.s32 %s19, %s26
      %p60 = scmp.eq.s32.totalorder %s59, 0
      %s62 = sadd.s32 %s61, 1
      %s63 = scalar_select %p60, %s61, %s62
      %p66 = pneg %p60
      %p67 = scmp.eq.s32.totalorder %s11, 1
      %p68 = por %p66, %p67
      %p69 = scmp.ne.s32.totalorder %s61, %s64
      %p70 = scmp.eq.s32.totalorder %s11, 0
      %p71 = por %p69, %p70
      %p72 = scmp.ne.s32.totalorder %s61, %s64
      %p73 = scmp.eq.s32.totalorder %s16, 1
      %p74 = por %p72, %p73
      %p75 = scmp.ne.s32.totalorder %s64, %s65
      %p76 = scmp.eq.s32.totalorder %s16, 0
      %p77 = por %p75, %p76
      %p78 = scmp.ne.s32.totalorder %s64, %s65
      %p79 = scmp.eq.s32.totalorder %s17, 1
      %p80 = por %p78, %p79
      %p82 = scmp.ne.s32.totalorder %s65, %s81
      %p83 = scmp.eq.s32.totalorder %s17, 0
      %p84 = por %p82, %p83
      %s85 = ssub.s32 %s18, %s30
      %p86 = scmp.eq.s32.totalorder %s85, 0
      %s88 = sadd.s32 %s87, 1
      %s89 = scalar_select %p86, %s87, %s88
      %p92 = pneg %p86
      %p93 = scmp.eq.s32.totalorder %s11, 1
      %p94 = por %p92, %p93
      %p95 = scmp.ne.s32.totalorder %s87, %s90
      %p96 = scmp.eq.s32.totalorder %s11, 0
      %p97 = por %p95, %p96
      %p98 = scmp.ne.s32.totalorder %s87, %s90
      %p99 = scmp.eq.s32.totalorder %s16, 1
      %p100 = por %p98, %p99
      %p101 = scmp.ne.s32.totalorder %s90, %s91
      %p102 = scmp.eq.s32.totalorder %s16, 0
      %p103 = por %p101, %p102
      %p104 = scmp.ne.s32.totalorder %s90, %s91
      %p105 = scmp.eq.s32.totalorder %s17, 1
      %p106 = por %p104, %p105
      %p108 = scmp.ne.s32.totalorder %s91, %s107
      %p109 = scmp.eq.s32.totalorder %s17, 0
      %p110 = por %p108, %p109
      %p111 = scmp.le.s32.totalorder 1, %s11
      %p112 = scmp.lt.s32.totalorder %s11, 3
      %p113 = pnand %p111, %p112
      %p114 = pneg %p113
      // Predicated region
      $region9: #{smg_block_forward.3} parent=5 // pred_check
        _
      $region10: #{smg_block_forward.3} parent=5 // pred_check_branch
        %116 = sbr.rel (%p113) target = $region12
      $region11: #{smg_block_forward.3} parent=5 // pred_region
        %s117 = ssub.s32 %s11, 1
        // Predicated region
        $region13: #{smg_block_forward.3} parent=11 // pred_check
          %p118 = pneg %p77
        $region14: #{smg_block_forward.3} parent=11 // pred_check_branch
          %120 = sbr.rel (%p118) target = $region16
        $region15: #{smg_block_forward.3} parent=11 // pred_region
          %s121 = smul.u32 2, %s21
          %p122 = scmp.lt.s32.totalorder %s121, 1
          %s123 = scalar_select %p122, %s121, 1
          %s124 = smul.addr %s123, 8
          %s125 = scalar_lea.vmem %s1, %s124
          %s126 = smul.u32 2, %s21
        $region16: #{smg_block_forward.3} parent=11 // pred_fallthru
          _
      $region12: #{smg_block_forward.3} parent=5 // pred_fallthru
        _
      %p127 = scmp.lt.s32.totalorder %s11, 2
      // Predicated region
      $region17: #{smg_block_forward.3} parent=5 // pred_check
        %p128 = pneg %p127
      $region18: #{smg_block_forward.3} parent=5 // pred_check_branch
        %130 = sbr.rel (%p128) target = $region20
      $region19: #{smg_block_forward.3} parent=5 // pred_region
        // Predicated region
        $region21: #{smg_block_forward.3} parent=19 // pred_check
          %p131 = pneg %p45
        $region22: #{smg_block_forward.3} parent=19 // pred_check_branch
          %133 = sbr.rel (%p131) target = $region24
        $region23: #{smg_block_forward.3} parent=19 // pred_region
          %s134 = smul.u32 2, %s19
          %p135 = scmp.lt.s32.totalorder %s18, 1
          %s136 = scalar_select %p135, %s18, 1
          %p137 = scmp.lt.s32.totalorder %s134, 1
          %s138 = scalar_select %p137, %s134, 1
          %s139 = smul.addr %s136, 2
          %s140 = sadd.s32 %s138, %s139
          %s141 = smul.addr %s140, 8
          %s142 = scalar_lea.vmem %s0, %s141
          %s143 = smul.u32 2, %s19
        $region24: #{smg_block_forward.3} parent=19 // pred_fallthru
          _
      $region20: #{smg_block_forward.3} parent=5 // pred_fallthru
        _
      %p144 = scmp.le.s32.totalorder 1, %s11
      %p145 = scmp.lt.s32.totalorder %s11, 3
      %p146 = pnand %p144, %p145
      %p147 = pneg %p146
      // Predicated region
      $region25: #{smg_block_forward.3} parent=5 // pred_check
        _
      $region26: #{smg_block_forward.3} parent=5 // pred_check_branch
        %149 = sbr.rel (%p146) target = $region28
      $region27: #{smg_block_forward.3} parent=5 // pred_region
        %s150 = ssub.s32 %s11, 1
        %s151 = smul.u32 2, %s21
        %p152 = scmp.lt.s32.totalorder %s20, 1
        %s153 = scalar_select %p152, %s20, 1
        %p154 = scmp.lt.s32.totalorder %s151, 1
        %s155 = scalar_select %p154, %s151, 1
        %s156 = smul.addr %s153, 2
        %s157 = sadd.s32 %s155, %s156
        %s158 = smul.addr %s157, 8
        %s159 = scalar_lea.vmem %s0, %s158
        %p160 = pneg %p51
        %p161 = pneg %p48
        %s162 = smul.u32 2, %s21
        %p163 = scmp.lt.s32.totalorder %s162, 1
        %s164 = scalar_select %p163, %s162, 1
        %s165 = smul.addr %s164, 8
        %s166 = scalar_lea.vmem %s1, %s165
        %p167 = pneg %p77
        %p168 = pneg %p74
        %p169 = pneg %p103
        %p170 = pneg %p100
        %s171 = sand.u32 %s90, 1
        %s172 = scalar_lea.sflag [#allocation5], %s171
        %s173 = sand.u32 %s90, 1
        %s174 = smul.addr %s173, 8
        %s175 = scalar_lea.vmem [#allocation4], %s174
        %s176 = smul.u32 2, %s21
        %p177 = scmp.lt.s32.totalorder %s20, 1
        %s178 = scalar_select %p177, %s20, 1
        %p179 = scmp.lt.s32.totalorder %s176, 1
        %s180 = scalar_select %p179, %s176, 1
        %s181 = smul.addr %s178, 2
        %s182 = sadd.s32 %s180, %s181
        %s183 = smul.addr %s182, 8
        %s184 = scalar_lea.vmem %s0, %s183
        %s185 = smul.u32 2, %s21
        %s186 = smul.u32 2, %s21
        %p187 = scmp.lt.s32.totalorder %s186, 1
        %s188 = scalar_select %p187, %s186, 1
        %s189 = smul.addr %s188, 8
        %s190 = scalar_lea.vmem %s1, %s189
        %s191 = smul.u32 2, %s21
        %p192 = scmp.eq.s32.totalorder %s21, 0
        // Predicated region
        $region29: #{smg_block_forward.3} parent=27 // pred_check
          %p193 = pneg %p192
        $region30: #{smg_block_forward.3} parent=27 // pred_check_branch
          %195 = sbr.rel (%p193) target = $region32
        $region31: #{smg_block_forward.3} parent=27 // pred_region
          %vm196 = vcmask 64512
          %197 = vst.msk [vmem:[#allocation2] sm:$0xff] %vm196, 0.0
          %vm198 = vcmask 7168
          %199 = vst.msk [vmem:[#allocation3] sm:$0xff] %vm198, 0.0
        $region32: #{smg_block_forward.3} parent=27 // pred_fallthru
          _
        %v200 = vld [vmem:[%s184] sm:$0xff]
        %v201 = vld [vmem:[%s184 + $0x8] sm:$0xff]
        %v202 = vld [vmem:[%s190] sm:$0xff]
        %v203 = vld [vmem:[%s190 + $0x8] sm:$0xff]
        %v204 = vsub.f32 %v200, %v202
        %v205 = vsub.f32 %v201, %v203
        %v206 = vld [vmem:[#allocation3] sm:$0xff]
        %v207 = vmul.f32 %v204, %v204
        %v208 = vmul.f32 %v205, %v205
        %v209 = vadd.f32 %v207, %v208
        %210 = vadd.xlane.f32.xlu0 %v209
        %v211 = vpop.xlane.xlu0 %210
        %v212 = vadd.f32 %v206, %v211
        %vm213 = vcmask 7168
        %214 = vst.msk [vmem:[#allocation3] sm:$0xff] %vm213, %v212
        %v215 = vld [vmem:[#allocation2] sm:$0xff]
        %216 = vmatprep.subr.mxu0 0.0
        %217 = vmatpush1.xpose.msra.mxu0 0.0
        %218 = vmatprep.subr.mxu0 0.0
        %219 = vmatpush1.xpose.msra.mxu0 0.0
        %220 = vmatprep.subr.mxu0 0.0
        %221 = vmatpush1.xpose.msra.mxu0 0.0
        %222 = vmatprep.subr.mxu0 0.0
        %223 = vmatpush1.xpose.msra.mxu0 0.0
        %224 = vmatprep.subr.mxu0 0.0
        %225 = vmatpush1.xpose.msra.mxu0 0.0
        %226 = vmatprep.subr.mxu0 0.0
        %227 = vmatpush1.xpose.msra.mxu0 0.0
        %228 = vmatprep.subr.mxu0 0.0
        %229 = vmatpush1.xpose.msra.mxu0 0.0
        %230 = vmatprep.subr.mxu0 0.0
        %231 = vmatpush1.xpose.msra.mxu0 0.0
        %232 = vmatprep.subr.mxu0 0.0
        %233 = vmatpush1.xpose.msra.mxu0 0.0
        %234 = vmatprep.subr.mxu0 0.0
        %235 = vmatpush1.xpose.msra.mxu0 0.0
        %236 = vmatprep.subr.mxu0 0.0
        %237 = vmatpush1.xpose.msra.mxu0 0.0
        %238 = vmatprep.subr.mxu0 0.0
        %239 = vmatpush1.xpose.msra.mxu0 0.0
        %240 = vmatprep.subr.mxu0 0.0
        %241 = vmatpush1.xpose.msra.mxu0 0.0
        %242 = vmatprep.subr.mxu0 0.0
        %243 = vmatpush1.xpose.msra.mxu0 0.0
        %244 = vmatprep.subr.mxu0 0.0
        %245 = vmatpush1.xpose.msra.mxu0 0.0
        %246 = vmatprep.subr.mxu0 %v205
        %247 = vmatpush1.xpose.msra.mxu0 %v204
        %248 = vmatprep.subr.mxu0 0.0
        %249 = vmatpush2.xpose.msra.mxu0 0.0
        %250 = vmatprep.subr.mxu0 0.0
        %251 = vmatpush2.xpose.msra.mxu0 0.0
        %252 = vmatprep.subr.mxu0 0.0
        %253 = vmatpush2.xpose.msra.mxu0 0.0
        %254 = vmatprep.subr.mxu0 0.0
        %255 = vmatpush2.xpose.msra.mxu0 0.0
        %256 = vmatprep.subr.mxu0 0.0
        %257 = vmatpush2.xpose.msra.mxu0 0.0
        %258 = vmatprep.subr.mxu0 0.0
        %259 = vmatpush2.xpose.msra.mxu0 0.0
        %260 = vmatprep.subr.mxu0 0.0
        %261 = vmatpush2.xpose.msra.mxu0 0.0
        %262 = vmatprep.subr.mxu0 0.0
        %263 = vmatpush2.xpose.msra.mxu0 0.0
        %264 = vmatprep.subr.mxu0 0.0
        %265 = vmatpush2.xpose.msra.mxu0 0.0
        %266 = vmatprep.subr.mxu0 0.0
        %267 = vmatpush2.xpose.msra.mxu0 0.0
        %268 = vmatprep.subr.mxu0 0.0
        %269 = vmatpush2.xpose.msra.mxu0 0.0
        %270 = vmatprep.subr.mxu0 0.0
        %271 = vmatpush2.xpose.msra.mxu0 0.0
        %272 = vmatprep.subr.mxu0 0.0
        %273 = vmatpush2.xpose.msra.mxu0 0.0
        %274 = vmatprep.subr.mxu0 0.0
        %275 = vmatpush2.xpose.msra.mxu0 0.0
        %276 = vmatprep.subr.mxu0 0.0
        %277 = vmatpush2.xpose.msra.mxu0 0.0
        %278 = vmatprep.subr.mxu0 0.0
        %279 = vmatpush2.xpose.msra.mxu0 0.0
        %280 = vmatprep.mubr.f32.mxu0 %v205
        %281 = vmatmul.mubr.f32.gmra.mxu0 %v204
        %v282 = vpop.f32.mrf.mxu0
        %v283 = vadd.f32 0.0, %v282
        %v284 = vpop.f32.mrf.mxu0
        %285 = vdwg.mxu0
        %v286 = vadd.f32 %v215, %v283
        %vm287 = vcmask 64512
        %288 = vst.msk [vmem:[#allocation2] sm:$0xff] %vm287, %v286
        // Predicated region
        $region33: #{smg_block_forward.3} parent=27 // pred_check
          %p289 = pneg %p192
        $region34: #{smg_block_forward.3} parent=27 // pred_check_branch
          %291 = sbr.rel (%p289) target = $region36
        $region35: #{smg_block_forward.3} parent=27 // pred_region
          %v292 = vld [vmem:[#allocation3] sm:$0xff]
          %v293 = vrsqrt.pop %v292
          %v294 = vld [vmem:[#allocation2] sm:$0xff]
          %295 = vxpose.xlu0.b32.start [1/16] %v293, 128
          %296 = vxpose.xlu0.b32.cont [2/16] 0.0, 128
          %297 = vxpose.xlu0.b32.cont [3/16] 0.0, 128
          %298 = vxpose.xlu0.b32.cont [4/16] 0.0, 128
          %299 = vxpose.xlu0.b32.cont [5/16] 0.0, 128
          %300 = vxpose.xlu0.b32.cont [6/16] 0.0, 128
          %301 = vxpose.xlu0.b32.cont [7/16] 0.0, 128
          %302 = vxpose.xlu0.b32.cont [8/16] 0.0, 128
          %303 = vxpose.xlu0.b32.cont [9/16] 0.0, 128
          %304 = vxpose.xlu0.b32.cont [10/16] 0.0, 128
          %305 = vxpose.xlu0.b32.cont [11/16] 0.0, 128
          %306 = vxpose.xlu0.b32.cont [12/16] 0.0, 128
          %307 = vxpose.xlu0.b32.cont [13/16] 0.0, 128
          %308 = vxpose.xlu0.b32.cont [14/16] 0.0, 128
          %309 = vxpose.xlu0.b32.cont [15/16] 0.0, 128
          %310 = vxpose.xlu0.b32.end [16/16] 0.0, 128
          %v311 = vpop.trf.xlu0
          %v312 = vpop.trf.xlu0
          %v313 = vpop.trf.xlu0
          %v314 = vpop.trf.xlu0
          %v315 = vpop.trf.xlu0
          %v316 = vpop.trf.xlu0
          %v317 = vpop.trf.xlu0
          %v318 = vpop.trf.xlu0
          %v319 = vpop.trf.xlu0
          %v320 = vpop.trf.xlu0
          %v321 = vpop.trf.xlu0
          %v322 = vpop.trf.xlu0
          %v323 = vpop.trf.xlu0
          %v324 = vpop.trf.xlu0
          %v325 = vpop.trf.xlu0
          %v326 = vpop.trf.xlu0
          %328 = vset.pattern.permute.xlu0 0
          %329 = vperm.xlu0 %328, %v293
          %v330 = vpop.permute.xlu0 %329
          %v332 = vlaneseq
          %v333 = vshrl.u32 %v332, 7
          %v334 = vsub.s32 0, %v333
          %v335 = vrot.slane %v311, %v334
          %v336 = vmul.f32 %v330, %v335
          %v337 = vmul.f32 %v294, %v336
          %v338 = vadd.f32 %v337, 1.0
          %339 = vst.msk [vmem:[%s175] sm:$0xff] %vm287, %v338
        $region36: #{smg_block_forward.3} parent=27 // pred_fallthru
          _
        %s340 = sand.u32 %s90, 1
        %s341 = scalar_lea.sflag [#allocation5], %s340
        %s342 = sand.u32 %s90, 1
        %s343 = smul.addr %s342, 8
        %s344 = scalar_lea.vmem [#allocation4], %s343
        // Predicated region
        $region37: #{smg_block_forward.3} parent=27 // pred_check
          %p345 = pneg %p100
        $region38: #{smg_block_forward.3} parent=27 // pred_check_branch
          %347 = sbr.rel (%p345) target = $region40
        $region39: #{smg_block_forward.3} parent=27 // pred_region
          %s349 = ssub.s32 128, 128
          %350 = vsyncadd %s341, %s349
          %s351 = smul.addr %s20, 128
          %s352 = scalar_lea.hbm %s2, %s351
          %s354 = sshll.u32 %s344, 4
          %s355 = int_to_ptr.vmem [resolvable:$true] %s354
          %357 = dma.vmem_to_hbm [thread:$0]  %s355, 128, %s352, %s341
        $region40: #{smg_block_forward.3} parent=27 // pred_fallthru
          _
      $region28: #{smg_block_forward.3} parent=5 // pred_fallthru
        _
      %p358 = scmp.le.s32.totalorder 2, %s11
      // Predicated region
      $region41: #{smg_block_forward.3} parent=5 // pred_check
        %p359 = pneg %p358
      $region42: #{smg_block_forward.3} parent=5 // pred_check_branch
        %361 = sbr.rel (%p359) target = $region44
      $region43: #{smg_block_forward.3} parent=5 // pred_region
        %s362 = ssub.s32 %s11, 2
        // Predicated region
        $region45: #{smg_block_forward.3} parent=43 // pred_check
          %p363 = pneg %p106
        $region46: #{smg_block_forward.3} parent=43 // pred_check_branch
          %365 = sbr.rel (%p363) target = $region48
        $region47: #{smg_block_forward.3} parent=43 // pred_region
          %s366 = sand.u32 %s91, 1
          %s367 = scalar_lea.sflag [#allocation5], %s366
          %s368 = sand.u32 %s91, 1
          %s369 = smul.addr %s368, 8
          %s370 = scalar_lea.vmem [#allocation4], %s369
          %371 = dma.done %s367, 128
        $region48: #{smg_block_forward.3} parent=43 // pred_fallthru
          _
      $region44: #{smg_block_forward.3} parent=5 // pred_fallthru
        _
    $region6: #{smg_block_forward.3} parent=1 // loop_footer
      %s15 = sadd.s32 1, %s11
    $region7: #{smg_block_forward.3} parent=1 // loop_footer_branch
      %10 = sbr.rel target = $region3
    $region8: #{smg_block_forward.3} parent=1 // loop_exit
      _
    %372 = vsyncpa [#allocation5], 1
    %s373 = scalar_lea.sflag [#allocation5], 1
    %374 = vsyncpa %s373, 1

</llo_original>
